<compile_context>
chip_gen: v5e
topology: v5e:2x2
jax: 0.10.0
libtpu: 0.0.40
codegen_flags: <defaults>
</compile_context>

<pallas_src>
import functools

import jax
import jax.numpy as jnp
from jax import lax
from jax.experimental import pallas as pl
from jax.experimental.pallas import tpu as pltpu


_LANE_CANDIDATES = (1024, 512, 256, 128)  # lane-dense slab widths (mult. of 128)
_MAX_BLOCK_ELEMS = 512 * 1024             # 2 MiB of f32 per input block


def _round_up(x, m):
    return ((x + m - 1) // m) * m


def _geometry(total):
    """Pick a lane-dense (rows, cols) slab view and row-block tiling."""
    cols = None
    for c in _LANE_CANDIDATES:
        if total >= c and total % c == 0:   # zero-copy reshape path
            cols = c
            break
    if cols is None:                        # ragged: pad only a tiny lane tail
        cols = 1024 if total >= 1024 else 128
    padded = _round_up(total, cols)
    rows = padded // cols
    max_block_rows = max(8, _MAX_BLOCK_ELEMS // cols)
    grid = pl.cdiv(rows, max_block_rows)
    if rows >= 16 and grid < 2:
        grid = 2                            # dual-TC streaming on v7x megacore
    if grid == 1:
        block_rows = rows                   # full-extent block (8,128 rule waived)
    else:
        block_rows = _round_up(pl.cdiv(rows, grid), 8)
    return cols, rows, padded, grid, block_rows


def _as_slab(x, rows, cols, padded):
    """View x as a (rows, cols) slab; only pads a small lane tail if ragged."""
    flat = x.reshape(-1)
    if padded != flat.shape[0]:
        flat = jnp.pad(flat, (0, padded - flat.shape[0]))
    return flat.reshape(rows, cols)


# -----------------------------------------------------------------------------
# Kernels
# -----------------------------------------------------------------------------
def _huber_partial_kernel(pred_ref, true_ref, out_ref, *, delta, scale,
                          valid_rows, block_rows, cols, needs_mask):
    """Per-block scaled partial sum of the Huber loss (scalar in out[0, 0])."""
    p = pred_ref[...].astype(jnp.float32)
    t = true_ref[...].astype(jnp.float32)
    r = jnp.abs(t - p)
    loss = jnp.where(r < delta, 0.5 * r * r, delta * r - 0.5 * delta * delta)
    if needs_mask:
        # Mask rows of the last (partial) block that lie past the array extent.
        row0 = pl.program_id(0) * block_rows
        rid = lax.broadcasted_iota(jnp.int32, (block_rows, cols), 0) + row0
        loss = jnp.where(rid < valid_rows, loss, 0.0)
    s = jnp.sum(loss) * scale
    rid8 = lax.broadcasted_iota(jnp.int32, (8, 128), 0)
    cid = lax.broadcasted_iota(jnp.int32, (8, 128), 1)
    out_ref[...] = jnp.where((rid8 == 0) & (cid == 0), s, 0.0)


def _huber_elemwise_kernel(pred_ref, true_ref, out_ref, *, delta):
    """Per-element Huber loss (reduction='none')."""
    p = pred_ref[...].astype(jnp.float32)
    t = true_ref[...].astype(jnp.float32)
    r = jnp.abs(t - p)
    loss = jnp.where(r < delta, 0.5 * r * r, delta * r - 0.5 * delta * delta)
    out_ref[...] = loss.astype(out_ref.dtype)


# -----------------------------------------------------------------------------
# Wrappers
# -----------------------------------------------------------------------------
def _huber_sum(y_pred, y_true, delta, scale):
    """scale * sum(huber(y_pred, y_true)) over all elements."""
    total = y_pred.size
    cols, rows, padded, grid, block_rows = _geometry(total)
    pred = _as_slab(y_pred, rows, cols, padded)
    true = _as_slab(y_true, rows, cols, padded)
    needs_mask = grid * block_rows > rows
    in_bytes = (pred.dtype.itemsize + true.dtype.itemsize) * rows * cols

    kernel = functools.partial(
        _huber_partial_kernel, delta=float(delta), scale=float(scale),
        valid_rows=rows, block_rows=block_rows, cols=cols, needs_mask=needs_mask)

    partials = pl.pallas_call(
        kernel,
        out_shape=jax.ShapeDtypeStruct((grid * 8, 128), jnp.float32),
        grid_spec=pltpu.PrefetchScalarGridSpec(
            num_scalar_prefetch=0,
            grid=(grid,),
            in_specs=[
                pl.BlockSpec((block_rows, cols), lambda j: (j, 0)),
                pl.BlockSpec((block_rows, cols), lambda j: (j, 0)),
            ],
            out_specs=pl.BlockSpec((8, 128), lambda j: (j, 0)),
        ),
        compiler_params=pltpu.CompilerParams(
            dimension_semantics=("parallel",),
        ),
        cost_estimate=pl.CostEstimate(
            flops=6 * rows * cols,
            transcendentals=0,
            bytes_accessed=in_bytes + 4 * grid * 8 * 128,
        ),
    )(pred, true)
    # Tiny final reduction of per-block partials (scale already folded in).
    return jnp.sum(partials)


def _huber_elemwise(y_pred, y_true, delta):
    """Per-element Huber loss with the original input shape (reduction='none')."""
    orig_shape = y_pred.shape
    out_dtype = jnp.promote_types(y_pred.dtype, y_true.dtype)
    total = y_pred.size
    cols, rows, padded, grid, block_rows = _geometry(total)
    pred = _as_slab(y_pred, rows, cols, padded)
    true = _as_slab(y_true, rows, cols, padded)
    in_bytes = (pred.dtype.itemsize + true.dtype.itemsize) * rows * cols
    out_bytes = jnp.dtype(out_dtype).itemsize * rows * cols

    out = pl.pallas_call(
        functools.partial(_huber_elemwise_kernel, delta=float(delta)),
        out_shape=jax.ShapeDtypeStruct((rows, cols), out_dtype),
        grid_spec=pltpu.PrefetchScalarGridSpec(
            num_scalar_prefetch=0,
            grid=(grid,),
            in_specs=[
                pl.BlockSpec((block_rows, cols), lambda j: (j, 0)),
                pl.BlockSpec((block_rows, cols), lambda j: (j, 0)),
            ],
            out_specs=pl.BlockSpec((block_rows, cols), lambda j: (j, 0)),
        ),
        compiler_params=pltpu.CompilerParams(
            dimension_semantics=("parallel",),
        ),
        cost_estimate=pl.CostEstimate(
            flops=6 * rows * cols,
            transcendentals=0,
            bytes_accessed=in_bytes + out_bytes,
        ),
    )(pred, true)

    flat = out.reshape(-1)
    if padded != total:           # only ragged shapes pay the tail slice
        flat = flat[:total]
    return flat.reshape(orig_shape)


class HuberLoss:
    """JAX/Pallas port of the PyTorch HuberLoss module (forward only)."""

    def __init__(self, args=None, delta=1.0):
        self.delta = float(delta)
        self.args = args  # unused in forward, kept for parity with the module

    def __call__(self, y_pred, y_true, reduction="mean"):
        if reduction == "batchmean":
            return _huber_sum(y_pred, y_true, self.delta, 1.0 / y_pred.shape[0])
        elif reduction == "sum":
            return _huber_sum(y_pred, y_true, self.delta, 1.0)
        elif reduction == "mean":
            return _huber_sum(y_pred, y_true, self.delta, 1.0 / y_pred.size)
        else:
            return _huber_elemwise(y_pred, y_true, self.delta)


if __name__ == "__main__":
    key = jax.random.PRNGKey(0)
    loss_fn = HuberLoss(args=None, delta=1.0)

    def ref_elem(p, t, delta=1.0):
        p = p.astype(jnp.float32)
        t = t.astype(jnp.float32)
        r = jnp.abs(t - p)
        return jnp.where(r < delta, 0.5 * r * r, delta * r - 0.5 * delta * delta)

    # Case 1: small (batch, features) loss input, lane-divisible (zero-copy slab).
    k1, k2 = jax.random.split(key)
    B, N = 8, 256
    y_pred = jax.random.normal(k1, (B, N), dtype=jnp.float32)
    y_true = jax.random.normal(k2, (B, N), dtype=jnp.float32)

    out_mean = jax.block_until_ready(loss_fn(y_pred, y_true, reduction="mean"))
    out_sum = jax.block_until_ready(loss_fn(y_pred, y_true, reduction="sum"))
    out_bm = jax.block_until_ready(loss_fn(y_pred, y_true, reduction="batchmean"))
    out_none = jax.block_until_ready(loss_fn(y_pred, y_true, reduction="none"))

    r = ref_elem(y_pred, y_true)
    assert jnp.allclose(out_mean, r.mean(), rtol=1e-5, atol=1e-5)
    assert jnp.allclose(out_sum, r.sum(), rtol=1e-5, atol=1e-3)
    assert jnp.allclose(out_bm, r.sum() / B, rtol=1e-5, atol=1e-4)
    assert jnp.allclose(out_none, r, rtol=1e-6, atol=1e-6)

    # Case 2: ragged shape (not a multiple of 128) -> tiny tail pad path.
    k3, k4 = jax.random.split(k1)
    y_pred2 = jax.random.normal(k3, (5, 300), dtype=jnp.float32)
    y_true2 = jax.random.normal(k4, (5, 300), dtype=jnp.float32)

    out_mean2 = jax.block_until_ready(loss_fn(y_pred2, y_true2, reduction="mean"))
    out_none2 = jax.block_until_ready(loss_fn(y_pred2, y_true2, reduction="none"))

    r2 = ref_elem(y_pred2, y_true2)
    assert jnp.allclose(out_mean2, r2.mean(), rtol=1e-5, atol=1e-5)
    assert jnp.allclose(out_none2, r2, rtol=1e-6, atol=1e-6)

    # Case 3: multi-block grid (grid>=2) with a partial, in-kernel-masked last block.
    k5, k6 = jax.random.split(k2)
    y_pred3 = jax.random.normal(k5, (20, 1024), dtype=jnp.float32)
    y_true3 = jax.random.normal(k6, (20, 1024), dtype=jnp.float32)

    out_sum3 = jax.block_until_ready(loss_fn(y_pred3, y_true3, reduction="sum"))
    out_none3 = jax.block_until_ready(loss_fn(y_pred3, y_true3, reduction="none"))

    r3 = ref_elem(y_pred3, y_true3)
    assert jnp.allclose(out_sum3, r3.sum(), rtol=1e-5, atol=1e-2)
    assert jnp.allclose(out_none3, r3, rtol=1e-6, atol=1e-6)

    # Case 4: mixed dtypes (bf16 predictions, f32 targets) -> in-kernel upcast.
    k7, k8 = jax.random.split(k3)
    y_pred4 = jax.random.normal(k7, (4, 128), dtype=jnp.bfloat16)
    y_true4 = jax.random.normal(k8, (4, 128), dtype=jnp.float32)

    out_mean4 = jax.block_until_ready(loss_fn(y_pred4, y_true4, reduction="mean"))
    out_none4 = jax.block_until_ready(loss_fn(y_pred4, y_true4, reduction="none"))

    r4 = ref_elem(y_pred4, y_true4)
    assert jnp.allclose(out_mean4, r4.mean(), rtol=1e-5, atol=1e-5)
    assert jnp.allclose(out_none4, r4, rtol=1e-5, atol=1e-5)

    print("KERNEL_OK")
</pallas_src>

<mosaic_0001>
module attributes {stable_mosaic.version = 11 : i64} {
  func.func @_huber_partial_kernel(%arg0: i32, %arg1: memref<2x1024xf32, #tpu.memory_space<vmem>>, %arg2: memref<2x1024xf32, #tpu.memory_space<vmem>>, %arg3: memref<8x128xf32, #tpu.memory_space<vmem>>) attributes {dimension_semantics = [#tpu.dimension_semantics<parallel>], iteration_bounds = array<i64: 1>, scalar_prefetch = 0 : i64, scratch_operands = 0 : i64, tpu.core_type = #tpu.core_type<tc>, window_params = [{transform_indices = @transform_0, window_bounds = array<i64: 2, 1024>}, {transform_indices = @transform_1, window_bounds = array<i64: 2, 1024>}, {transform_indices = @transform_2, window_bounds = array<i64: 8, 128>}]} {
    %c0 = arith.constant 0 : index
    %c0_0 = arith.constant 0 : index
    %0 = vector.load %arg1[%c0, %c0_0] : memref<2x1024xf32, #tpu.memory_space<vmem>>, vector<2x1024xf32>
    %c0_1 = arith.constant 0 : index
    %c0_2 = arith.constant 0 : index
    %1 = vector.load %arg2[%c0_1, %c0_2] : memref<2x1024xf32, #tpu.memory_space<vmem>>, vector<2x1024xf32>
    %2 = arith.subf %1, %0 : vector<2x1024xf32>
    %3 = math.absf %2 : vector<2x1024xf32>
    %cst = arith.constant 1.000000e+00 : f32
    %4 = vector.broadcast %cst : f32 to vector<2x1024xf32>
    %5 = arith.cmpf olt, %3, %4 : vector<2x1024xf32>
    %cst_3 = arith.constant 5.000000e-01 : f32
    %6 = vector.broadcast %cst_3 : f32 to vector<2x1024xf32>
    %7 = arith.mulf %6, %3 : vector<2x1024xf32>
    %8 = arith.mulf %7, %3 : vector<2x1024xf32>
    %cst_4 = arith.constant 1.000000e+00 : f32
    %9 = vector.broadcast %cst_4 : f32 to vector<2x1024xf32>
    %10 = arith.mulf %9, %3 : vector<2x1024xf32>
    %cst_5 = arith.constant 5.000000e-01 : f32
    %11 = vector.broadcast %cst_5 : f32 to vector<2x1024xf32>
    %12 = arith.subf %10, %11 : vector<2x1024xf32>
    %13 = arith.select %5, %8, %12 : vector<2x1024xi1>, vector<2x1024xf32>
    %14 = vector.shape_cast %13 : vector<2x1024xf32> to vector<1x2x1024xf32>
    %cst_6 = arith.constant dense<0.000000e+00> : vector<1xf32>
    %15 = vector.multi_reduction <add>, %14, %cst_6 [1, 2] : vector<1x2x1024xf32> to vector<1xf32>
    %16 = vector.shape_cast %15 : vector<1xf32> to vector<1x1x1xf32>
    %17 = vector.extract %16[0, 0, 0] : f32 from vector<1x1x1xf32>
    %cst_7 = arith.constant 4.8828125E-4 : f32
    %18 = arith.mulf %17, %cst_7 : f32
    %19 = tpu.iota {dimensions = array<i32: 0>} : vector<8x128xi32>
    %20 = tpu.iota {dimensions = array<i32: 1>} : vector<8x128xi32>
    %c0_i32 = arith.constant 0 : i32
    %21 = vector.broadcast %c0_i32 : i32 to vector<8x128xi32>
    %22 = arith.cmpi eq, %19, %21 : vector<8x128xi32>
    %c0_i32_8 = arith.constant 0 : i32
    %23 = vector.broadcast %c0_i32_8 : i32 to vector<8x128xi32>
    %24 = arith.cmpi eq, %20, %23 : vector<8x128xi32>
    %25 = arith.andi %22, %24 : vector<8x128xi1>
    %cst_9 = arith.constant 0.000000e+00 : f32
    %26 = vector.broadcast %18 : f32 to vector<8x128xf32>
    %27 = vector.broadcast %cst_9 : f32 to vector<8x128xf32>
    %28 = arith.select %25, %26, %27 : vector<8x128xi1>, vector<8x128xf32>
    %c0_10 = arith.constant 0 : index
    %c0_11 = arith.constant 0 : index
    %29 = vector.load %arg3[%c0_10, %c0_11] : memref<8x128xf32, #tpu.memory_space<vmem>>, vector<8x128xf32>
    tpu.vector_store %arg3[%c0_10, %c0_11], %28 {strides = array<i32>} : memref<8x128xf32, #tpu.memory_space<vmem>>, vector<8x128xf32>,
    return
  }
  func.func @transform_0(%arg0: i32) -> (i32, i32) {
    %c0_i32 = arith.constant 0 : i32
    %c0_i32_0 = arith.constant 0 : i32
    return %arg0, %c0_i32 : i32, i32
  }
  func.func @transform_1(%arg0: i32) -> (i32, i32) {
    %c0_i32 = arith.constant 0 : i32
    %c0_i32_0 = arith.constant 0 : i32
    return %arg0, %c0_i32 : i32, i32
  }
  func.func @transform_2(%arg0: i32) -> (i32, i32) {
    %c0_i32 = arith.constant 0 : i32
    %c0_i32_0 = arith.constant 0 : i32
    return %arg0, %c0_i32 : i32, i32
  }
}

</mosaic_0001>

<llo_original>
// kernel: tpu_custom_call.1
$region0: #{tpu_custom_call.1}
  #allocation0 [shape = 'u32[]', space=smem, size = 0x4, offset = 0x4, fixed_abs, tag = 'smem constant byte address 0x4 - core index']
  #allocation1 [shape = 'u32[72,128]{1,0:T(1,128)}', space=vmem, size = 0x9000, scoped, tag = 'internal scratch']
  %s0 = inlined_call_operand.hbm [shape: f32[2,1024], index: 0, kind: input, shape index: {}]
  %s1 = inlined_call_operand.hbm [shape: f32[2,1024], index: 1, kind: input, shape index: {}]
  %s2 = inlined_call_operand.hbm [shape: f32[8,128], index: 2, kind: output, shape index: {}]
  %s3 = sld [smem:[#allocation0]]
  $region26: #{tpu_custom_call.1} parent=0
    _
  %s5 = ssub.s32 1, %s3
  %s6 = scalar_select 0, %s5, %s3
  $region1: #{tpu_custom_call.1} parent=0
    #allocation2 [shape = 'u8[8192]{0}', space=vmem, size = 0x2000, scoped, tag = 'input window, operand 0, single buffered']
    #allocation3 [shape = 's32[1]{0}', space=sflag, size = 0x4, scoped, tag = 'scoped memory for tpu_custom_call.1']
    #allocation4 [shape = 's32[1]{0}', space=sflag, size = 0x4, scoped, tag = 'scoped memory for tpu_custom_call.1']
    #allocation5 [shape = 'u8[8192]{0}', space=vmem, size = 0x2000, scoped, tag = 'input window, operand 1, single buffered']
    #allocation6 [shape = 's32[1]{0}', space=sflag, size = 0x4, scoped, tag = 'scoped memory for tpu_custom_call.1']
    #allocation7 [shape = 'u8[4096]{0}', space=vmem, size = 0x1000, scoped, tag = 'output window, operand 0, single buffered']
    %7 = vsyncpa [#allocation3], 0
    %8 = vsyncpa [#allocation6], 0
    %9 = vsyncpa [#allocation4], 0
    // Predicated region
    $region2: #{tpu_custom_call.1} parent=1 // pred_check
      _
    $region3: #{tpu_custom_call.1} parent=1 // pred_check_branch
      %11 = sbr.rel (0) target = $region5
    $region4: #{tpu_custom_call.1} parent=1 // pred_region
      %13 = vsyncadd [#allocation3], 0
      %s15 = sshll.u32 %s0, 4
      %s16 = int_to_ptr.hbm [resolvable:$true] %s15
      %s17 = sshll.u32 [#allocation2], 4
      %s18 = int_to_ptr.vmem [resolvable:$true] %s17
      %20 = dma.hbm_to_vmem [thread:$0]  %s16, 256, %s18, [#allocation3]
    $region5: #{tpu_custom_call.1} parent=1 // pred_fallthru
      _
    // Predicated region
    $region6: #{tpu_custom_call.1} parent=1 // pred_check
      _
    $region7: #{tpu_custom_call.1} parent=1 // pred_check_branch
      %22 = sbr.rel (0) target = $region9
    $region8: #{tpu_custom_call.1} parent=1 // pred_region
      %24 = vsyncadd [#allocation6], 0
      %s26 = sshll.u32 %s1, 4
      %s27 = int_to_ptr.hbm [resolvable:$true] %s26
      %s28 = sshll.u32 [#allocation5], 4
      %s29 = int_to_ptr.vmem [resolvable:$true] %s28
      %31 = dma.hbm_to_vmem [thread:$0]  %s27, 256, %s29, [#allocation6]
    $region9: #{tpu_custom_call.1} parent=1 // pred_fallthru
      _
    // Predicated region
    $region10: #{tpu_custom_call.1} parent=1 // pred_check
      _
    $region11: #{tpu_custom_call.1} parent=1 // pred_check_branch
      %33 = sbr.rel (0) target = $region13
    $region12: #{tpu_custom_call.1} parent=1 // pred_region
      %35 = dma.done [#allocation3], 256
    $region13: #{tpu_custom_call.1} parent=1 // pred_fallthru
      _
    // Predicated region
    $region14: #{tpu_custom_call.1} parent=1 // pred_check
      _
    $region15: #{tpu_custom_call.1} parent=1 // pred_check_branch
      %37 = sbr.rel (0) target = $region17
    $region16: #{tpu_custom_call.1} parent=1 // pred_region
      %39 = dma.done [#allocation6], 256
    $region17: #{tpu_custom_call.1} parent=1 // pred_fallthru
      _
    %v40 = vld [vmem:[#allocation2] sm:$0xff]
    %v41 = vld [vmem:[#allocation2 + $0x8] sm:$0xff]
    %v42 = vld [vmem:[#allocation5] sm:$0xff]
    %v43 = vld [vmem:[#allocation5 + $0x8] sm:$0xff]
    %v44 = vsub.f32 %v42, %v40
    %v45 = vsub.f32 %v43, %v41
    %v46 = vand.u32 2147483647, %v44
    %v47 = vand.u32 2147483647, %v45
    %vm48 = vcmp.lt.f32.partialorder %v46, 1.0
    %vm49 = vcmp.lt.f32.partialorder %v47, 1.0
    %v50 = vmul.f32 %v46, 0.5
    %v51 = vmul.f32 %v47, 0.5
    %v52 = vmul.f32 %v50, %v46
    %v53 = vmul.f32 %v51, %v47
    %v54 = vsub.f32 %v46, 0.5
    %v55 = vsub.f32 %v47, 0.5
    %v56 = vsel %vm48, %v52, %v54
    %v57 = vsel %vm49, %v53, %v55
    %60 = vst [vmem:[#allocation1] ss:$4 sm:$0xff] %v56
    %s61 = scalar_lea.vmem [#allocation1], 32
    %62 = vst [vmem:[%s61] ss:$4 sm:$0xff] %v57
    %v63 = vld.sshfl [vmem:[#allocation1] sm:$0xff pattern:$0x73625140]
    %v64 = vld.sshfl [vmem:[#allocation1 + $0x8] sm:$0xff pattern:$0x73625140]
    %v65 = vld.sshfl [vmem:[#allocation1 + $0x10] sm:$0xff pattern:$0x73625140]
    %v66 = vld.sshfl [vmem:[#allocation1 + $0x18] sm:$0xff pattern:$0x73625140]
    %v67 = vld.sshfl [vmem:[#allocation1 + $0x20] sm:$0xff pattern:$0x73625140]
    %v68 = vld.sshfl [vmem:[#allocation1 + $0x28] sm:$0xff pattern:$0x73625140]
    %v69 = vld.sshfl [vmem:[#allocation1 + $0x30] sm:$0xff pattern:$0x73625140]
    %v70 = vld.sshfl [vmem:[#allocation1 + $0x38] sm:$0xff pattern:$0x73625140]
    %vm79 = vcmask 1041408
    %v80 = vsel %vm79, %v63, 0.0
    %v81 = vsel %vm79, %v64, 0.0
    %v82 = vadd.f32 %v80, %v81
    %v83 = vsel %vm79, %v65, 0.0
    %v84 = vadd.f32 %v82, %v83
    %v85 = vsel %vm79, %v66, 0.0
    %v86 = vadd.f32 %v84, %v85
    %v87 = vsel %vm79, %v67, 0.0
    %v88 = vadd.f32 %v86, %v87
    %v89 = vsel %vm79, %v68, 0.0
    %v90 = vadd.f32 %v88, %v89
    %v91 = vsel %vm79, %v69, 0.0
    %v92 = vadd.f32 %v90, %v91
    %v93 = vsel %vm79, %v70, 0.0
    %v94 = vadd.f32 %v92, %v93
    %95 = vadd.xlane.f32.xlu0 %v94
    %v96 = vpop.xlane.xlu0 %95
    %v97 = vrot.slane %v96, 4
    %v98 = vadd.f32 %v96, %v97
    %v99 = vrot.slane %v98, 2
    %v100 = vadd.f32 %v98, %v99
    %v101 = vrot.slane %v100, 1
    %v102 = vadd.f32 %v100, %v101
    %s103 = vtos %v102
    %s104 = smul.f32 %s103, 0.00048828125
    %v105 = vlaneseq
    %v106 = vshrl.u32 %v105, 7
    %v107 = vlaneseq
    %v108 = vand.u32 %v107, 127
    %vm109 = vcmp.eq.s32.totalorder %v106, 0
    %vm110 = vcmp.eq.s32.totalorder %v108, 0
    %vm111 = vmand %vm109, %vm110
    %v112 = vstv %s104
    %v113 = vsel %vm111, %v112, 0.0
    %114 = vst [vmem:[#allocation7] sm:$0xff] %v113
    // Predicated region
    $region18: #{tpu_custom_call.1} parent=1 // pred_check
      _
    $region19: #{tpu_custom_call.1} parent=1 // pred_check_branch
      %116 = sbr.rel (0) target = $region21
    $region20: #{tpu_custom_call.1} parent=1 // pred_region
      %118 = vsyncadd [#allocation4], 0
      %s120 = sshll.u32 [#allocation7], 4
      %s121 = int_to_ptr.vmem [resolvable:$true] %s120
      %s122 = sshll.u32 %s2, 4
      %s123 = int_to_ptr.hbm [resolvable:$true] %s122
      %125 = dma.vmem_to_hbm [thread:$0]  %s121, 128, %s123, [#allocation4]
    $region21: #{tpu_custom_call.1} parent=1 // pred_fallthru
      _
    // Predicated region
    $region22: #{tpu_custom_call.1} parent=1 // pred_check
      _
    $region23: #{tpu_custom_call.1} parent=1 // pred_check_branch
      %127 = sbr.rel (0) target = $region25
    $region24: #{tpu_custom_call.1} parent=1 // pred_region
      %129 = dma.done [#allocation4], 128
    $region25: #{tpu_custom_call.1} parent=1 // pred_fallthru
      _
    %130 = vsyncpa [#allocation3], 1
    %131 = vsyncpa [#allocation6], 1
    %132 = vsyncpa [#allocation4], 1

</llo_original>
